<compile_context>
chip_gen: v5e
topology: v5e:2x2
jax: 0.10.0
libtpu: 0.0.40
codegen_flags: <defaults>
</compile_context>

<pallas_src>
import jax
import jax.numpy as jnp
from jax.experimental import pallas as pl
from jax.experimental.pallas import tpu as pltpu

PATCH = 16       # synthetic patch-embed size
EMBED_DIM = 256  # lane-dense embed dim: fills the MXU on v6e/v7x (2 passes on v5e)


def _round_up(x, m):
    return ((x + m - 1) // m) * m


# ---------------------------------------------------------------------------
# Kernel 1: preprocess_inputs
#   (image - mean) * (1/std), concat trimap, zero-pad to multiple of 32.
#   bf16 output, one full-width lane-dense store per channel.
# ---------------------------------------------------------------------------
def _make_preprocess_kernel(H, W, Wp, RT, out_dtype):
    pad_w = Wp - W  # static

    def kernel(img_ref, tri_ref, mean_ref, inv_std_ref, out_ref):
        # img_ref: (1, 3, RT, W) f32   tri_ref: (1, 1, RT, W) f32
        # out_ref: (1, 4, RT, Wp) bf16
        # mean_ref / inv_std_ref: (3,) f32 scalars in SMEM
        row0 = pl.program_id(1) * RT
        row = row0 + jax.lax.broadcasted_iota(jnp.int32, (RT, Wp), 0)
        valid = row < H  # rows >= H (incl. grid overhang rows) are the zero pad

        def store_channel(c, val_w):
            # One lane-dense full-width (RT, Wp) store per channel: value is
            # zero-extended to Wp in-register, so there is no masked vst.msk
            # partial store and no second pad-column store pass.
            if pad_w > 0:
                val = jnp.concatenate(
                    [val_w, jnp.zeros((RT, pad_w), jnp.float32)], axis=-1)
            else:
                val = val_w
            out_ref[0, c, :, :] = jnp.where(valid, val, 0.0).astype(out_dtype)

        for c in range(3):
            store_channel(c, (img_ref[0, c, :, :] - mean_ref[c]) * inv_std_ref[c])
        store_channel(3, tri_ref[0, 0, :, :])

    return kernel


def preprocess_inputs(image, trimap, pixel_mean, pixel_std):
    B, _, H, W = image.shape
    pad_H = (32 - H % 32) % 32
    pad_W = (32 - W % 32) % 32
    Hp, Wp = H + pad_H, W + pad_W

    # multiply by reciprocal instead of a per-pixel divide in the kernel
    inv_std = (1.0 / pixel_std).astype(jnp.float32)

    # Row tile 64: amortizes per-grid-step overhead (matters most on v7x's
    # faster HBM) while keeping the double-buffered working set ~12 MB at 4K
    # width, well inside the 32 MiB scoped-VMEM budget (v7x: 64 MiB physical).
    RT = min(64, Hp)
    n_row_tiles = pl.cdiv(Hp, RT)
    n_in_row_blocks = pl.cdiv(H, RT)  # row blocks that touch real input data

    def in_idx(b, t):
        # Row tiles fully inside the bottom pad re-read the last valid input
        # block (contents masked to zero anyway) instead of issuing a fully
        # out-of-bounds DMA.  Edge-block overhang rows are undefined and are
        # masked by `valid` in the kernel -- do not rely on them being zero.
        return (b, 0, jnp.minimum(t, n_in_row_blocks - 1), 0)

    out = pl.pallas_call(
        _make_preprocess_kernel(H, W, Wp, RT, jnp.bfloat16),
        out_shape=jax.ShapeDtypeStruct((B, 4, Hp, Wp), jnp.bfloat16),
        grid=(B, n_row_tiles),
        in_specs=[
            pl.BlockSpec((1, 3, RT, W), in_idx),
            pl.BlockSpec((1, 1, RT, W), in_idx),
            pl.BlockSpec(memory_space=pltpu.SMEM),   # pixel_mean (3,)
            pl.BlockSpec(memory_space=pltpu.SMEM),   # 1 / pixel_std (3,)
        ],
        out_specs=pl.BlockSpec((1, 4, RT, Wp), lambda b, t: (b, 0, t, 0)),
        compiler_params=pltpu.CompilerParams(
            dimension_semantics=("parallel", "parallel"),
            vmem_limit_bytes=32 * 1024 * 1024),
    )(image, trimap, pixel_mean, inv_std)
    return out, H, W


# ---------------------------------------------------------------------------
# Kernel 2: fused synthetic backbone (patch embed) + decoder (alpha + sigmoid)
#   Row-tiled over patches; bf16 MXU matmuls with f32 accumulation; the
#   (TM, EMBED_DIM) feature intermediate never leaves VMEM/vregs.
# ---------------------------------------------------------------------------
def _fused_backbone_decoder_kernel(p_ref, w1_ref, b1_ref, w2_ref, b2_ref, o_ref):
    # backbone: patch embedding (bf16 operands, f32 accumulate on the MXU)
    feats = jnp.dot(p_ref[...], w1_ref[...], preferred_element_type=jnp.float32)
    feats = feats + b1_ref[...]                                   # f32 epilogue
    # decoder: per-patch alpha logits + sigmoid, feats stays on-chip
    logits = jnp.dot(feats.astype(jnp.bfloat16), w2_ref[...],
                     preferred_element_type=jnp.float32) + b2_ref[...]
    o_ref[...] = jax.nn.sigmoid(logits).astype(o_ref.dtype)       # bf16 writeback


def fused_backbone_decoder(patches, w_embed, b_embed, w_dec, b_dec):
    N, K = patches.shape
    D = w_embed.shape[1]
    M = w_dec.shape[1]
    if N <= 256:
        TM = N                                        # tiny case: one full block
    else:
        # >= 2 grid steps so v7x's 2 TensorCores both get work, capped at 1024
        # patch rows (~2 MiB bf16 activations per buffer).
        TM = min(1024, _round_up(pl.cdiv(N, 2), 128))
    grid = (pl.cdiv(N, TM),)
    return pl.pallas_call(
        _fused_backbone_decoder_kernel,
        out_shape=jax.ShapeDtypeStruct((N, M), jnp.bfloat16),
        grid=grid,
        in_specs=[
            # patch rows (tiled); 3-deep buffering hides DMA jitter on v7x
            pl.BlockSpec((TM, K), lambda i: (i, 0),
                         pipeline_mode=pl.Buffered(3)),
            pl.BlockSpec((K, D), lambda i: (0, 0)),    # w_embed (resident)
            pl.BlockSpec((1, D), lambda i: (0, 0)),    # b_embed
            pl.BlockSpec((D, M), lambda i: (0, 0)),    # w_dec (resident)
            pl.BlockSpec((1, M), lambda i: (0, 0)),    # b_dec
        ],
        out_specs=pl.BlockSpec((TM, M), lambda i: (i, 0)),
        compiler_params=pltpu.CompilerParams(
            dimension_semantics=("parallel",),          # shards across v7x's 2 TCs
            vmem_limit_bytes=32 * 1024 * 1024),
    )(patches, w_embed, b_embed, w_dec, b_dec)


# ---------------------------------------------------------------------------
# Forward
# ---------------------------------------------------------------------------
def vitmatte_forward(batched_inputs, params):
    image = batched_inputs["image"]
    trimap = batched_inputs["trimap"]

    # preprocess_inputs (Pallas kernel 1, bf16 padded output)
    x, H, W = preprocess_inputs(image, trimap, params["pixel_mean"], params["pixel_std"])
    B, _, Hp, Wp = x.shape

    # TODO(synk): the real ViT backbone (attention blocks) and DetailCapture
    # decoder are injected sub-modules of ViTMatte; here they are replaced by a
    # deterministic synthetic patch-embed + per-patch linear alpha decoder
    # whose hot path runs as a single fused Pallas MXU kernel.
    P = PATCH
    nH, nW = Hp // P, Wp // P
    # TODO(synk): patchify / un-patchify relayouts stay in XLA (now moving bf16,
    # i.e. half the bytes of the previous f32 version); folding them into the
    # kernels' BlockSpecs would need an in-kernel (nW, 4, P, P) relayout that
    # Mosaic does not lower robustly.
    patches = (
        x.reshape(B, 4, nH, P, nW, P)
        .transpose(0, 2, 4, 1, 3, 5)
        .reshape(B * nH * nW, 4 * P * P)   # already bf16 from kernel 1
    )

    # fused backbone + decoder (Pallas kernel 2, bf16 output)
    alpha = fused_backbone_decoder(
        patches,
        params["w_embed"].astype(jnp.bfloat16),
        params["b_embed"],
        params["w_dec"].astype(jnp.bfloat16),
        params["b_dec"],
    )

    phas = (
        alpha.reshape(B, nH, nW, P, P)
        .transpose(0, 1, 3, 2, 4)
        .reshape(B, 1, Hp, Wp)
    )

    # outputs['phas'] = outputs['phas'][:, :, :H, :W]
    # Kept in bf16 end-to-end (alpha in [0,1] after sigmoid; per perf review).
    phas = phas[:, :, :H, :W]
    return {"phas": phas}


# ---------------------------------------------------------------------------
# Main
# ---------------------------------------------------------------------------
if __name__ == "__main__":
    key = jax.random.PRNGKey(0)
    k1, k2, k3, k4 = jax.random.split(key, 4)

    B, H, W = 2, 24, 24  # not a multiple of 32 -> exercises the in-kernel padding path
    image = jax.random.uniform(k1, (B, 3, H, W), jnp.float32) * 255.0
    trimap = jax.random.uniform(k2, (B, 1, H, W), jnp.float32)

    params = {
        "pixel_mean": jnp.array([123.675, 116.280, 103.530], jnp.float32),
        "pixel_std": jnp.array([58.395, 57.120, 57.375], jnp.float32),
        "w_embed": jax.random.normal(k3, (4 * PATCH * PATCH, EMBED_DIM), jnp.float32) * 0.02,
        "b_embed": jnp.zeros((1, EMBED_DIM), jnp.float32),
        "w_dec": jax.random.normal(k4, (EMBED_DIM, PATCH * PATCH), jnp.float32) * 0.02,
        "b_dec": jnp.zeros((1, PATCH * PATCH), jnp.float32),
    }

    out = vitmatte_forward({"image": image, "trimap": trimap}, params)
    jax.block_until_ready(out["phas"])

    assert out["phas"].shape == (B, 1, H, W), out["phas"].shape
    assert bool(jnp.all(jnp.isfinite(out["phas"].astype(jnp.float32))))
    print("KERNEL_OK")
</pallas_src>

<mosaic_0001>
module attributes {stable_mosaic.version = 11 : i64} {
  func.func @kernel(%arg0: i32, %arg1: i32, %arg2: memref<1x3x32x24xf32, #tpu.memory_space<vmem>>, %arg3: memref<1x1x32x24xf32, #tpu.memory_space<vmem>>, %arg4: memref<3xf32, #tpu.memory_space<smem>>, %arg5: memref<3xf32, #tpu.memory_space<smem>>, %arg6: memref<1x4x32x32xbf16, #tpu.memory_space<vmem>>) attributes {dimension_semantics = [#tpu.dimension_semantics<parallel>, #tpu.dimension_semantics<parallel>], iteration_bounds = array<i64: 2, 1>, scalar_prefetch = 0 : i64, scratch_operands = 0 : i64, tpu.core_type = #tpu.core_type<tc>, window_params = [{transform_indices = @transform_0, window_bounds = array<i64: 1, 3, 32, 24>}, {transform_indices = @transform_1, window_bounds = array<i64: 1, 1, 32, 24>}, {transform_indices = @transform_2, window_bounds = array<i64: 3>}, {transform_indices = @transform_3, window_bounds = array<i64: 3>}, {transform_indices = @transform_4, window_bounds = array<i64: 1, 4, 32, 32>}]} {
    %c32_i32 = arith.constant 32 : i32
    %0 = arith.muli %arg1, %c32_i32 : i32
    %1 = tpu.iota {dimensions = array<i32: 0>} : vector<32x32xi32>
    %2 = vector.broadcast %0 : i32 to vector<32x32xi32>
    %3 = arith.addi %2, %1 : vector<32x32xi32>
    %c24_i32 = arith.constant 24 : i32
    %4 = vector.broadcast %c24_i32 : i32 to vector<32x32xi32>
    %5 = arith.cmpi slt, %3, %4 : vector<32x32xi32>
    %c0 = arith.constant 0 : index
    %c0_0 = arith.constant 0 : index
    %c0_1 = arith.constant 0 : index
    %c0_2 = arith.constant 0 : index
    %6 = vector.load %arg2[%c0, %c0_0, %c0_1, %c0_2] : memref<1x3x32x24xf32, #tpu.memory_space<vmem>>, vector<1x1x32x24xf32>
    %7 = vector.shape_cast %6 : vector<1x1x32x24xf32> to vector<32x24xf32>
    %c0_3 = arith.constant 0 : index
    %8 = memref.load %arg4[%c0_3] : memref<3xf32, #tpu.memory_space<smem>>
    %9 = vector.broadcast %8 : f32 to vector<32x24xf32>
    %10 = arith.subf %7, %9 : vector<32x24xf32>
    %c0_4 = arith.constant 0 : index
    %11 = memref.load %arg5[%c0_4] : memref<3xf32, #tpu.memory_space<smem>>
    %12 = vector.broadcast %11 : f32 to vector<32x24xf32>
    %13 = arith.mulf %10, %12 : vector<32x24xf32>
    %cst = arith.constant 0.000000e+00 : f32
    %14 = vector.broadcast %cst : f32 to vector<32x8xf32>
    %15 = tpu.concatenate %13, %14 in 1 : vector<32x24xf32>, vector<32x8xf32> -> vector<32x32xf32>
    %cst_5 = arith.constant 0.000000e+00 : f32
    %16 = vector.broadcast %cst_5 : f32 to vector<32x32xf32>
    %17 = arith.select %5, %15, %16 : vector<32x32xi1>, vector<32x32xf32>
    %18 = arith.truncf %17 : vector<32x32xf32> to vector<32x32xbf16>
    %c0_6 = arith.constant 0 : index
    %c0_7 = arith.constant 0 : index
    %c0_8 = arith.constant 0 : index
    %c0_9 = arith.constant 0 : index
    %19 = vector.load %arg6[%c0_6, %c0_7, %c0_8, %c0_9] : memref<1x4x32x32xbf16, #tpu.memory_space<vmem>>, vector<1x1x32x32xbf16>
    %20 = vector.shape_cast %19 : vector<1x1x32x32xbf16> to vector<32x32xbf16>
    %21 = vector.shape_cast %18 : vector<32x32xbf16> to vector<1x1x32x32xbf16>
    tpu.vector_store %arg6[%c0_6, %c0_7, %c0_8, %c0_9], %21 {strides = array<i32>} : memref<1x4x32x32xbf16, #tpu.memory_space<vmem>>, vector<1x1x32x32xbf16>,
    %c0_10 = arith.constant 0 : index
    %c1 = arith.constant 1 : index
    %c0_11 = arith.constant 0 : index
    %c0_12 = arith.constant 0 : index
    %22 = vector.load %arg2[%c0_10, %c1, %c0_11, %c0_12] : memref<1x3x32x24xf32, #tpu.memory_space<vmem>>, vector<1x1x32x24xf32>
    %23 = vector.shape_cast %22 : vector<1x1x32x24xf32> to vector<32x24xf32>
    %c1_13 = arith.constant 1 : index
    %24 = memref.load %arg4[%c1_13] : memref<3xf32, #tpu.memory_space<smem>>
    %25 = vector.broadcast %24 : f32 to vector<32x24xf32>
    %26 = arith.subf %23, %25 : vector<32x24xf32>
    %c1_14 = arith.constant 1 : index
    %27 = memref.load %arg5[%c1_14] : memref<3xf32, #tpu.memory_space<smem>>
    %28 = vector.broadcast %27 : f32 to vector<32x24xf32>
    %29 = arith.mulf %26, %28 : vector<32x24xf32>
    %cst_15 = arith.constant 0.000000e+00 : f32
    %30 = vector.broadcast %cst_15 : f32 to vector<32x8xf32>
    %31 = tpu.concatenate %29, %30 in 1 : vector<32x24xf32>, vector<32x8xf32> -> vector<32x32xf32>
    %cst_16 = arith.constant 0.000000e+00 : f32
    %32 = vector.broadcast %cst_16 : f32 to vector<32x32xf32>
    %33 = arith.select %5, %31, %32 : vector<32x32xi1>, vector<32x32xf32>
    %34 = arith.truncf %33 : vector<32x32xf32> to vector<32x32xbf16>
    %c0_17 = arith.constant 0 : index
    %c1_18 = arith.constant 1 : index
    %c0_19 = arith.constant 0 : index
    %c0_20 = arith.constant 0 : index
    %35 = vector.load %arg6[%c0_17, %c1_18, %c0_19, %c0_20] : memref<1x4x32x32xbf16, #tpu.memory_space<vmem>>, vector<1x1x32x32xbf16>
    %36 = vector.shape_cast %35 : vector<1x1x32x32xbf16> to vector<32x32xbf16>
    %37 = vector.shape_cast %34 : vector<32x32xbf16> to vector<1x1x32x32xbf16>
    tpu.vector_store %arg6[%c0_17, %c1_18, %c0_19, %c0_20], %37 {strides = array<i32>} : memref<1x4x32x32xbf16, #tpu.memory_space<vmem>>, vector<1x1x32x32xbf16>,
    %c0_21 = arith.constant 0 : index
    %c2 = arith.constant 2 : index
    %c0_22 = arith.constant 0 : index
    %c0_23 = arith.constant 0 : index
    %38 = vector.load %arg2[%c0_21, %c2, %c0_22, %c0_23] : memref<1x3x32x24xf32, #tpu.memory_space<vmem>>, vector<1x1x32x24xf32>
    %39 = vector.shape_cast %38 : vector<1x1x32x24xf32> to vector<32x24xf32>
    %c2_24 = arith.constant 2 : index
    %40 = memref.load %arg4[%c2_24] : memref<3xf32, #tpu.memory_space<smem>>
    %41 = vector.broadcast %40 : f32 to vector<32x24xf32>
    %42 = arith.subf %39, %41 : vector<32x24xf32>
    %c2_25 = arith.constant 2 : index
    %43 = memref.load %arg5[%c2_25] : memref<3xf32, #tpu.memory_space<smem>>
    %44 = vector.broadcast %43 : f32 to vector<32x24xf32>
    %45 = arith.mulf %42, %44 : vector<32x24xf32>
    %cst_26 = arith.constant 0.000000e+00 : f32
    %46 = vector.broadcast %cst_26 : f32 to vector<32x8xf32>
    %47 = tpu.concatenate %45, %46 in 1 : vector<32x24xf32>, vector<32x8xf32> -> vector<32x32xf32>
    %cst_27 = arith.constant 0.000000e+00 : f32
    %48 = vector.broadcast %cst_27 : f32 to vector<32x32xf32>
    %49 = arith.select %5, %47, %48 : vector<32x32xi1>, vector<32x32xf32>
    %50 = arith.truncf %49 : vector<32x32xf32> to vector<32x32xbf16>
    %c0_28 = arith.constant 0 : index
    %c2_29 = arith.constant 2 : index
    %c0_30 = arith.constant 0 : index
    %c0_31 = arith.constant 0 : index
    %51 = vector.load %arg6[%c0_28, %c2_29, %c0_30, %c0_31] : memref<1x4x32x32xbf16, #tpu.memory_space<vmem>>, vector<1x1x32x32xbf16>
    %52 = vector.shape_cast %51 : vector<1x1x32x32xbf16> to vector<32x32xbf16>
    %53 = vector.shape_cast %50 : vector<32x32xbf16> to vector<1x1x32x32xbf16>
    tpu.vector_store %arg6[%c0_28, %c2_29, %c0_30, %c0_31], %53 {strides = array<i32>} : memref<1x4x32x32xbf16, #tpu.memory_space<vmem>>, vector<1x1x32x32xbf16>,
    %c0_32 = arith.constant 0 : index
    %c0_33 = arith.constant 0 : index
    %c0_34 = arith.constant 0 : index
    %c0_35 = arith.constant 0 : index
    %54 = vector.load %arg3[%c0_32, %c0_33, %c0_34, %c0_35] : memref<1x1x32x24xf32, #tpu.memory_space<vmem>>, vector<1x1x32x24xf32>
    %55 = vector.shape_cast %54 : vector<1x1x32x24xf32> to vector<32x24xf32>
    %cst_36 = arith.constant 0.000000e+00 : f32
    %56 = vector.broadcast %cst_36 : f32 to vector<32x8xf32>
    %57 = tpu.concatenate %55, %56 in 1 : vector<32x24xf32>, vector<32x8xf32> -> vector<32x32xf32>
    %cst_37 = arith.constant 0.000000e+00 : f32
    %58 = vector.broadcast %cst_37 : f32 to vector<32x32xf32>
    %59 = arith.select %5, %57, %58 : vector<32x32xi1>, vector<32x32xf32>
    %60 = arith.truncf %59 : vector<32x32xf32> to vector<32x32xbf16>
    %c0_38 = arith.constant 0 : index
    %c3 = arith.constant 3 : index
    %c0_39 = arith.constant 0 : index
    %c0_40 = arith.constant 0 : index
    %61 = vector.load %arg6[%c0_38, %c3, %c0_39, %c0_40] : memref<1x4x32x32xbf16, #tpu.memory_space<vmem>>, vector<1x1x32x32xbf16>
    %62 = vector.shape_cast %61 : vector<1x1x32x32xbf16> to vector<32x32xbf16>
    %63 = vector.shape_cast %60 : vector<32x32xbf16> to vector<1x1x32x32xbf16>
    tpu.vector_store %arg6[%c0_38, %c3, %c0_39, %c0_40], %63 {strides = array<i32>} : memref<1x4x32x32xbf16, #tpu.memory_space<vmem>>, vector<1x1x32x32xbf16>,
    return
  }
  func.func @transform_0(%arg0: i32, %arg1: i32) -> (i32, i32, i32, i32) {
    %c0_i32 = arith.constant 0 : i32
    %0 = arith.minsi %arg1, %c0_i32 : i32
    %c0_i32_0 = arith.constant 0 : i32
    %c0_i32_1 = arith.constant 0 : i32
    %c0_i32_2 = arith.constant 0 : i32
    return %arg0, %c0_i32_0, %0, %c0_i32_1 : i32, i32, i32, i32
  }
  func.func @transform_1(%arg0: i32, %arg1: i32) -> (i32, i32, i32, i32) {
    %c0_i32 = arith.constant 0 : i32
    %0 = arith.minsi %arg1, %c0_i32 : i32
    %c0_i32_0 = arith.constant 0 : i32
    %c0_i32_1 = arith.constant 0 : i32
    %c0_i32_2 = arith.constant 0 : i32
    return %arg0, %c0_i32_0, %0, %c0_i32_1 : i32, i32, i32, i32
  }
  func.func @transform_2(%arg0: i32, %arg1: i32) -> i32 {
    %c0_i32 = arith.constant 0 : i32
    %c0_i32_0 = arith.constant 0 : i32
    return %c0_i32 : i32
  }
  func.func @transform_3(%arg0: i32, %arg1: i32) -> i32 {
    %c0_i32 = arith.constant 0 : i32
    %c0_i32_0 = arith.constant 0 : i32
    return %c0_i32 : i32
  }
  func.func @transform_4(%arg0: i32, %arg1: i32) -> (i32, i32, i32, i32) {
    %c0_i32 = arith.constant 0 : i32
    %c0_i32_0 = arith.constant 0 : i32
    %c0_i32_1 = arith.constant 0 : i32
    return %arg0, %c0_i32, %arg1, %c0_i32_0 : i32, i32, i32, i32
  }
}

</mosaic_0001>

<llo_original>
// kernel: tpu_custom_call.1
$region0: #{tpu_custom_call.1}
  #allocation0 [shape = 'u32[]', space=smem, size = 0x4, offset = 0x4, fixed_abs, tag = 'smem constant byte address 0x4 - core index']
  #allocation1 [shape = 'u32[72,128]{1,0:T(1,128)}', space=vmem, size = 0x9000, scoped, tag = 'internal scratch']
  #allocation12 [shape = 's32[]', space=sflag, size = 0x4, offset = 0, fixed_abs, tag = 'sflag constant byte address 0x0 - dummy sync flag']
  %s0 = inlined_call_operand.hbm [shape: f32[2,3,24,24], index: 0, kind: input, shape index: {}]
  %s1 = inlined_call_operand.hbm [shape: f32[2,1,24,24], index: 1, kind: input, shape index: {}]
  %s2 = inlined_call_operand.vmem [shape: f32[3], index: 2, kind: input, shape index: {}]
  %s3 = inlined_call_operand.vmem [shape: f32[3], index: 3, kind: input, shape index: {}]
  %s4 = inlined_call_operand.hbm [shape: bf16[2,4,32,32], index: 4, kind: output, shape index: {}]
  %s5 = sld [smem:[#allocation0]]
  $region65: #{tpu_custom_call.1} parent=0
    _
  %s7 = ssub.s32 1, %s5
  %s8 = scalar_select 0, %s7, %s5
  $region1: #{tpu_custom_call.1} parent=0
    #allocation2 [shape = 'u8[98304]{0}', space=vmem, size = 0x18000, scoped, tag = 'input window, operand 0']
    #allocation3 [shape = 's32[2]{0}', space=sflag, size = 0x8, scoped, tag = 'scoped memory for tpu_custom_call.1']
    #allocation4 [shape = 's32[2]{0}', space=sflag, size = 0x8, scoped, tag = 'scoped memory for tpu_custom_call.1']
    #allocation5 [shape = 's32[2]{0}', space=sflag, size = 0x8, scoped, tag = 'scoped memory for tpu_custom_call.1']
    #allocation6 [shape = 'u8[32768]{0}', space=vmem, size = 0x8000, scoped, tag = 'input window, operand 1']
    #allocation7 [shape = 's32[2]{0}', space=sflag, size = 0x8, scoped, tag = 'scoped memory for tpu_custom_call.1']
    #allocation8 [shape = 'u8[512]{0}', space=smem, size = 0x200, scoped, tag = 'input window, operand 2, single buffered']
    #allocation9 [shape = 'u8[512]{0}', space=smem, size = 0x200, scoped, tag = 'input window, operand 3, single buffered']
    #allocation10 [shape = 's32[1]{0}', space=sflag, size = 0x4, scoped, tag = 'scoped memory for tpu_custom_call.1']
    #allocation11 [shape = 'u8[65536]{0}', space=vmem, size = 0x10000, scoped, tag = 'output window, operand 0']
    %9 = vsyncpa [#allocation3], 0
    %s10 = scalar_lea.sflag [#allocation3], 1
    %11 = vsyncpa %s10, 0
    %12 = vsyncpa [#allocation7], 0
    %s13 = scalar_lea.sflag [#allocation7], 1
    %14 = vsyncpa %s13, 0
    %15 = vsyncpa [#allocation5], 0
    %16 = vsyncpa [#allocation10], 0
    %17 = vsyncpa [#allocation4], 0
    %s18 = scalar_lea.sflag [#allocation4], 1
    %19 = vsyncpa %s18, 0
    loop: start=0, step=1, limit=4
    $region2: #{tpu_custom_call.1} parent=1 // loop_pre_header
      _
    $region3: #{tpu_custom_call.1} parent=1 // loop_header
      %s21 = sphi 0, %s25
      %p22 = scmp.ge.s32.totalorder %s21, 4
      %s28 = sphi 0, %s40
      %s29 = sphi 0, %s36
      %s30 = sphi 0, %s28
      %s31 = sphi 0, %s29
      %s32 = sphi 0, %s30
      %s33 = sphi 0, %s31
      %s49 = sphi 0, %s51
      %s52 = sphi 0, %s49
      %s53 = sphi 0, %s52
      %s69 = sphi 0, %s53
      %s81 = sphi 0, %s83
      %s84 = sphi 0, %s81
      %s85 = sphi 0, %s84
      %s101 = sphi 0, %s85
      %s105 = sphi 0, %s105
      %s107 = sphi 0, %s105
      %s108 = sphi 0, %s107
      %s122 = sphi 0, %s108
      %s126 = sphi 0, %s126
      %s128 = sphi 0, %s126
      %s129 = sphi 0, %s128
      %s143 = sphi 0, %s129
      %s151 = sphi 0, %s153
      %s154 = sphi 0, %s151
      %s155 = sphi 0, %s154
      %s171 = sphi 0, %s155
    $region4: #{tpu_custom_call.1} parent=1 // loop_header_branch
      %24 = sbr.rel (%p22) target = $region8
    $region5: #{tpu_custom_call.1} parent=1 // loop_body
      %s26 = ssub.s32 %s21, 1
      %s27 = ssub.s32 %s21, 2
      %s34 = sadd.s32 1, %s29
      %p35 = scmp.ge.s32.totalorder %s34, 1
      %s36 = scalar_select %p35, 0, %s34
      %s37 = sadd.s32 1, %s28
      %s38 = scalar_select %p35, %s37, %s28
      %p39 = scmp.ge.s32.totalorder %s38, 2
      %s40 = scalar_select %p39, 0, %s38
      %p41 = scmp.lt.s32.totalorder %s29, 0
      %s42 = scalar_select %p41, %s29, 0
      %p43 = scmp.lt.s32.totalorder %s36, 0
      %s44 = scalar_select %p43, %s36, 0
      %s45 = ssub.s32 %s28, %s40
      %s46 = ssub.s32 %s42, %s44
      %s47 = sor.u32 %s45, %s46
      %p48 = scmp.eq.s32.totalorder %s47, 0
      %s50 = sadd.s32 %s49, 1
      %s51 = scalar_select %p48, %s49, %s50
      %p54 = pneg %p48
      %p55 = scmp.eq.s32.totalorder %s21, 1
      %p56 = por %p54, %p55
      %p57 = scmp.ne.s32.totalorder %s49, %s52
      %p58 = scmp.eq.s32.totalorder %s21, 0
      %p59 = por %p57, %p58
      %p60 = scmp.ne.s32.totalorder %s49, %s52
      %p61 = scmp.eq.s32.totalorder %s26, 1
      %p62 = por %p60, %p61
      %p63 = scmp.ne.s32.totalorder %s52, %s53
      %p64 = scmp.eq.s32.totalorder %s26, 0
      %p65 = por %p63, %p64
      %p66 = scmp.ne.s32.totalorder %s52, %s53
      %p67 = scmp.eq.s32.totalorder %s27, 1
      %p68 = por %p66, %p67
      %p70 = scmp.ne.s32.totalorder %s53, %s69
      %p71 = scmp.eq.s32.totalorder %s27, 0
      %p72 = por %p70, %p71
      %p73 = scmp.lt.s32.totalorder %s29, 0
      %s74 = scalar_select %p73, %s29, 0
      %p75 = scmp.lt.s32.totalorder %s36, 0
      %s76 = scalar_select %p75, %s36, 0
      %s77 = ssub.s32 %s28, %s40
      %s78 = ssub.s32 %s74, %s76
      %s79 = sor.u32 %s77, %s78
      %p80 = scmp.eq.s32.totalorder %s79, 0
      %s82 = sadd.s32 %s81, 1
      %s83 = scalar_select %p80, %s81, %s82
      %p86 = pneg %p80
      %p87 = scmp.eq.s32.totalorder %s21, 1
      %p88 = por %p86, %p87
      %p89 = scmp.ne.s32.totalorder %s81, %s84
      %p90 = scmp.eq.s32.totalorder %s21, 0
      %p91 = por %p89, %p90
      %p92 = scmp.ne.s32.totalorder %s81, %s84
      %p93 = scmp.eq.s32.totalorder %s26, 1
      %p94 = por %p92, %p93
      %p95 = scmp.ne.s32.totalorder %s84, %s85
      %p96 = scmp.eq.s32.totalorder %s26, 0
      %p97 = por %p95, %p96
      %p98 = scmp.ne.s32.totalorder %s84, %s85
      %p99 = scmp.eq.s32.totalorder %s27, 1
      %p100 = por %p98, %p99
      %p102 = scmp.ne.s32.totalorder %s85, %s101
      %p103 = scmp.eq.s32.totalorder %s27, 0
      %p104 = por %p102, %p103
      %s106 = sadd.s32 %s105, 1
      %p109 = scmp.eq.s32.totalorder %s21, 1
      %p110 = scmp.ne.s32.totalorder %s105, %s107
      %p111 = scmp.eq.s32.totalorder %s21, 0
      %p112 = por %p110, %p111
      %p113 = scmp.ne.s32.totalorder %s105, %s107
      %p114 = scmp.eq.s32.totalorder %s26, 1
      %p115 = por %p113, %p114
      %p116 = scmp.ne.s32.totalorder %s107, %s108
      %p117 = scmp.eq.s32.totalorder %s26, 0
      %p118 = por %p116, %p117
      %p119 = scmp.ne.s32.totalorder %s107, %s108
      %p120 = scmp.eq.s32.totalorder %s27, 1
      %p121 = por %p119, %p120
      %p123 = scmp.ne.s32.totalorder %s108, %s122
      %p124 = scmp.eq.s32.totalorder %s27, 0
      %p125 = por %p123, %p124
      %s127 = sadd.s32 %s126, 1
      %p130 = scmp.eq.s32.totalorder %s21, 1
      %p131 = scmp.ne.s32.totalorder %s126, %s128
      %p132 = scmp.eq.s32.totalorder %s21, 0
      %p133 = por %p131, %p132
      %p134 = scmp.ne.s32.totalorder %s126, %s128
      %p135 = scmp.eq.s32.totalorder %s26, 1
      %p136 = por %p134, %p135
      %p137 = scmp.ne.s32.totalorder %s128, %s129
      %p138 = scmp.eq.s32.totalorder %s26, 0
      %p139 = por %p137, %p138
      %p140 = scmp.ne.s32.totalorder %s128, %s129
      %p141 = scmp.eq.s32.totalorder %s27, 1
      %p142 = por %p140, %p141
      %p144 = scmp.ne.s32.totalorder %s129, %s143
      %p145 = scmp.eq.s32.totalorder %s27, 0
      %p146 = por %p144, %p145
      %s147 = ssub.s32 %s28, %s40
      %s148 = ssub.s32 %s29, %s36
      %s149 = sor.u32 %s147, %s148
      %p150 = scmp.eq.s32.totalorder %s149, 0
      %s152 = sadd.s32 %s151, 1
      %s153 = scalar_select %p150, %s151, %s152
      %p156 = pneg %p150
      %p157 = scmp.eq.s32.totalorder %s21, 1
      %p158 = por %p156, %p157
      %p159 = scmp.ne.s32.totalorder %s151, %s154
      %p160 = scmp.eq.s32.totalorder %s21, 0
      %p161 = por %p159, %p160
      %p162 = scmp.ne.s32.totalorder %s151, %s154
      %p163 = scmp.eq.s32.totalorder %s26, 1
      %p164 = por %p162, %p163
      %p165 = scmp.ne.s32.totalorder %s154, %s155
      %p166 = scmp.eq.s32.totalorder %s26, 0
      %p167 = por %p165, %p166
      %p168 = scmp.ne.s32.totalorder %s154, %s155
      %p169 = scmp.eq.s32.totalorder %s27, 1
      %p170 = por %p168, %p169
      %p172 = scmp.ne.s32.totalorder %s155, %s171
      %p173 = scmp.eq.s32.totalorder %s27, 0
      %p174 = por %p172, %p173
      %p175 = scmp.le.s32.totalorder 1, %s21
      %p176 = scmp.lt.s32.totalorder %s21, 3
      %p177 = pnand %p175, %p176
      %p178 = pneg %p177
      // Predicated region
      $region9: #{tpu_custom_call.1} parent=5 // pred_check
        _
      $region10: #{tpu_custom_call.1} parent=5 // pred_check_branch
        %180 = sbr.rel (%p177) target = $region12
      $region11: #{tpu_custom_call.1} parent=5 // pred_region
        %s181 = ssub.s32 %s21, 1
        // Predicated region
        $region13: #{tpu_custom_call.1} parent=11 // pred_check
          %p182 = pneg %p118
        $region14: #{tpu_custom_call.1} parent=11 // pred_check_branch
          %184 = sbr.rel (%p182) target = $region16
        $region15: #{tpu_custom_call.1} parent=11 // pred_region
          %186 = vsyncadd [#allocation5], 0
          %s188 = sshll.u32 %s2, 4
          %s189 = int_to_ptr.vmem [resolvable:$true] %s188
          %191 = dma.vmem_to_smem %s189, 16, [#allocation8], [#allocation5]
        $region16: #{tpu_custom_call.1} parent=11 // pred_fallthru
          _
        // Predicated region
        $region17: #{tpu_custom_call.1} parent=11 // pred_check
          %p192 = pneg %p139
        $region18: #{tpu_custom_call.1} parent=11 // pred_check_branch
          %194 = sbr.rel (%p192) target = $region20
        $region19: #{tpu_custom_call.1} parent=11 // pred_region
          %196 = vsyncadd [#allocation10], 0
          %s198 = sshll.u32 %s3, 4
          %s199 = int_to_ptr.vmem [resolvable:$true] %s198
          %201 = dma.vmem_to_smem %s199, 16, [#allocation9], [#allocation10]
        $region20: #{tpu_custom_call.1} parent=11 // pred_fallthru
          _
      $region12: #{tpu_custom_call.1} parent=5 // pred_fallthru
        _
      %p202 = scmp.lt.s32.totalorder %s21, 2
      // Predicated region
      $region21: #{tpu_custom_call.1} parent=5 // pred_check
        %p203 = pneg %p202
      $region22: #{tpu_custom_call.1} parent=5 // pred_check_branch
        %205 = sbr.rel (%p203) target = $region24
      $region23: #{tpu_custom_call.1} parent=5 // pred_region
        // Predicated region
        $region25: #{tpu_custom_call.1} parent=23 // pred_check
          %p206 = pneg %p59
        $region26: #{tpu_custom_call.1} parent=23 // pred_check_branch
          %208 = sbr.rel (%p206) target = $region28
        $region27: #{tpu_custom_call.1} parent=23 // pred_region
          #allocation13 [shape = 'u32[6]{0}', space=smem, size = 0x18, scoped, tag = 'DMA stride descriptor']
          %s209 = sand.u32 %s49, 1
          %s210 = scalar_lea.sflag [#allocation3], %s209
          %s211 = sand.u32 %s49, 1
          %s212 = smul.addr %s211, 96
          %s213 = scalar_lea.vmem [#allocation2], %s212
          %p214 = scmp.lt.s32.totalorder %s29, 0
          %s215 = scalar_select %p214, %s29, 0
          %s216 = smul.u32 4, %s215
          %s217 = ssub.s32 3, %s216
          %s218 = smul.u32 24, %s217
          %s219 = ssub.s32 96, %s218
          %s220 = sshll.u32 %s219, 4
          %221 = vsyncadd %s210, %s220
          %p222 = scmp.ne.s32.totalorder 0, %s218
          %s223 = smul.addr %s28, 9
          %s224 = sadd.s32 %s216, %s223
          %s225 = smul.addr %s224, 8
          %s226 = scalar_lea.hbm %s0, %s225
          %s227 = smul.u32 8, %s217
          %s228 = smul.u32 %s227, 3
          %s230 = sshll.u32 1, 14
          %s231 = sxor.u32 4294967295, %s230
          %s233 = sld [smem:[#allocation0]]
          %s234 = sadd.s32 2, %s233
          %s236 = sshll.u32 7, 26
          %s237 = sxor.u32 4294967295, %s236
          %s238 = sand.u32 0, %s237
          %s239 = sshll.u32 %s234, 26
          %s240 = sor.u32 %s238, %s239
          %s241 = sshll.u32 %s226, 4
          %s242 = int_to_ptr.hbm [resolvable:$true] %s241
          %s243 = sshll.u32 %s213, 4
          %s244 = int_to_ptr.vmem [resolvable:$true] %s243
          %s245 = sshll.u32 %s228, 4
          %250 = sst [smem:[#allocation13]] 384
          %s251 = scalar_lea.smem [#allocation13], 1
          %252 = sst [smem:[%s251]] 512
          %s253 = scalar_lea.smem [#allocation13], 2
          %254 = sst [smem:[%s253]] %s217
          %s255 = scalar_lea.smem [#allocation13], 3
          %256 = sst [smem:[%s255]] 128
          %s257 = scalar_lea.smem [#allocation13], 4
          %258 = sst [smem:[%s257]] 128
          %s259 = scalar_lea.smem [#allocation13], 5
          %260 = sst [smem:[%s259]] 8
          %262 = dma.general (%p222), %s242, %s245, %s244, %s210, [#allocation12], [#allocation13], %s240, 0
        $region28: #{tpu_custom_call.1} parent=23 // pred_fallthru
          _
        // Predicated region
        $region29: #{tpu_custom_call.1} parent=23 // pred_check
          %p263 = pneg %p91
        $region30: #{tpu_custom_call.1} parent=23 // pred_check_branch
          %265 = sbr.rel (%p263) target = $region32
        $region31: #{tpu_custom_call.1} parent=23 // pred_region
          %s266 = sand.u32 %s81, 1
          %s267 = scalar_lea.sflag [#allocation7], %s266
          %s268 = sand.u32 %s81, 1
          %s269 = smul.addr %s268, 32
          %s270 = scalar_lea.vmem [#allocation6], %s269
          %p271 = scmp.lt.s32.totalorder %s29, 0
          %s272 = scalar_select %p271, %s29, 0
          %s273 = smul.u32 4, %s272
          %s274 = ssub.s32 3, %s273
          %s275 = smul.u32 8, %s274
          %s276 = ssub.s32 32, %s275
          %s277 = sshll.u32 %s276, 4
          %278 = vsyncadd %s267, %s277
          %p279 = scmp.ne.s32.totalorder 0, %s275
          %s280 = smul.addr %s28, 3
          %s281 = sadd.s32 %s273, %s280
          %s282 = smul.addr %s281, 8
          %s283 = scalar_lea.hbm %s1, %s282
          %s284 = smul.u32 8, %s274
          %s285 = sshll.u32 %s283, 4
          %s286 = int_to_ptr.hbm [resolvable:$true] %s285
          %s287 = sshll.u32 %s270, 4
          %s288 = int_to_ptr.vmem [resolvable:$true] %s287
          %s289 = sshll.u32 %s284, 4
          %293 = dma.hbm_to_vmem [thread:$0]  (%p279), %s286, %s289, %s288, %s267, 128, 128, 8
        $region32: #{tpu_custom_call.1} parent=23 // pred_fallthru
          _
      $region24: #{tpu_custom_call.1} parent=5 // pred_fallthru
        _
      %p294 = scmp.le.s32.totalorder 1, %s21
      %p295 = scmp.lt.s32.totalorder %s21, 3
      %p296 = pnand %p294, %p295
      %p297 = pneg %p296
      // Predicated region
      $region33: #{tpu_custom_call.1} parent=5 // pred_check
        _
      $region34: #{tpu_custom_call.1} parent=5 // pred_check_branch
        %299 = sbr.rel (%p296) target = $region36
      $region35: #{tpu_custom_call.1} parent=5 // pred_region
        %s300 = ssub.s32 %s21, 1
        %s301 = sand.u32 %s52, 1
        %s302 = scalar_lea.sflag [#allocation3], %s301
        %s303 = sand.u32 %s52, 1
        %s304 = smul.addr %s303, 96
        %s305 = scalar_lea.vmem [#allocation2], %s304
        // Predicated region
        $region37: #{tpu_custom_call.1} parent=35 // pred_check
          %p306 = pneg %p65
        $region38: #{tpu_custom_call.1} parent=35 // pred_check_branch
          %308 = sbr.rel (%p306) target = $region40
        $region39: #{tpu_custom_call.1} parent=35 // pred_region
          %310 = dma.done %s302, 1536
        $region40: #{tpu_custom_call.1} parent=35 // pred_fallthru
          _
        %s311 = sand.u32 %s84, 1
        %s312 = scalar_lea.sflag [#allocation7], %s311
        %s313 = sand.u32 %s84, 1
        %s314 = smul.addr %s313, 32
        %s315 = scalar_lea.vmem [#allocation6], %s314
        // Predicated region
        $region41: #{tpu_custom_call.1} parent=35 // pred_check
          %p316 = pneg %p97
        $region42: #{tpu_custom_call.1} parent=35 // pred_check_branch
          %318 = sbr.rel (%p316) target = $region44
        $region43: #{tpu_custom_call.1} parent=35 // pred_region
          %320 = dma.done %s312, 512
        $region44: #{tpu_custom_call.1} parent=35 // pred_fallthru
          _
        // Predicated region
        $region45: #{tpu_custom_call.1} parent=35 // pred_check
          %p321 = pneg %p118
        $region46: #{tpu_custom_call.1} parent=35 // pred_check_branch
          %323 = sbr.rel (%p321) target = $region48
        $region47: #{tpu_custom_call.1} parent=35 // pred_region
          %325 = dma.done [#allocation5], 16
        $region48: #{tpu_custom_call.1} parent=35 // pred_fallthru
          _
        // Predicated region
        $region49: #{tpu_custom_call.1} parent=35 // pred_check
          %p326 = pneg %p139
        $region50: #{tpu_custom_call.1} parent=35 // pred_check_branch
          %328 = sbr.rel (%p326) target = $region52
        $region51: #{tpu_custom_call.1} parent=35 // pred_region
          %330 = dma.done [#allocation10], 16
        $region52: #{tpu_custom_call.1} parent=35 // pred_fallthru
          _
        %331 = sfence
        %s332 = sand.u32 %s52, 1
        %s333 = scalar_lea.sflag [#allocation3], %s332
        %s334 = sand.u32 %s52, 1
        %s335 = smul.addr %s334, 96
        %s336 = scalar_lea.vmem [#allocation2], %s335
        %p337 = pneg %p65
        %p338 = pneg %p62
        %s339 = sand.u32 %s84, 1
        %s340 = scalar_lea.sflag [#allocation7], %s339
        %s341 = sand.u32 %s84, 1
        %s342 = smul.addr %s341, 32
        %s343 = scalar_lea.vmem [#allocation6], %s342
        %p344 = pneg %p97
        %p345 = pneg %p94
        %p346 = pneg %p118
        %p347 = pneg %p115
        %p348 = pneg %p139
        %p349 = pneg %p136
        %p350 = pneg %p167
        %p351 = pneg %p164
        %s352 = sand.u32 %s154, 1
        %s353 = scalar_lea.sflag [#allocation4], %s352
        %s354 = sand.u32 %s154, 1
        %s355 = smul.addr %s354, 64
        %s356 = scalar_lea.vmem [#allocation11], %s355
        %p357 = scmp.lt.s32.totalorder %s31, 0
        %s358 = scalar_select %p357, %s31, 0
        %s359 = smul.u32 4, %s358
        %s360 = ssub.s32 3, %s359
        %s361 = smul.u32 24, %s360
        %p362 = scmp.lt.s32.totalorder %s31, 0
        %s363 = scalar_select %p362, %s31, 0
        %s364 = smul.u32 4, %s363
        %s365 = ssub.s32 3, %s364
        %s366 = smul.u32 8, %s365
        %s367 = smul.u32 4, %s31
        %s368 = smul.u32 %s31, 32
        %v369 = vlaneseq
        %v370 = vshrl.u32 %v369, 7
        %v371 = vadd.s32 %v370, 8
        %v372 = vadd.s32 %v370, 16
        %v373 = vadd.s32 %v370, 24
        %v374 = vstv %s368
        %v375 = vadd.s32 %v374, %v370
        %v376 = vadd.s32 %v374, %v371
        %v377 = vadd.s32 %v374, %v372
        %v378 = vadd.s32 %v374, %v373
        %vm379 = vcmp.lt.s32.totalorder %v375, 24
        %vm380 = vcmp.lt.s32.totalorder %v376, 24
        %vm381 = vcmp.lt.s32.totalorder %v377, 24
        %vm382 = vcmp.lt.s32.totalorder %v378, 24
        %v383 = vld [vmem:[%s305] sm:$0xff]
        %v384 = vld [vmem:[%s305 + $0x8] sm:$0xff]
        %v385 = vld [vmem:[%s305 + $0x10] sm:$0xff]
        %v386 = vld [vmem:[%s305 + $0x18] sm:$0xff]
        %s387 = sld [smem:[#allocation8]]
        %v388 = vstv %s387
        %v389 = vsub.f32 %v383, %v388
        %v390 = vsub.f32 %v384, %v388
        %v391 = vsub.f32 %v385, %v388
        %v392 = vsub.f32 %v386, %v388
        %s393 = sld [smem:[#allocation9]]
        %v394 = vstv %s393
        %v395 = vmul.f32 %v389, %v394
        %v396 = vmul.f32 %v390, %v394
        %v397 = vmul.f32 %v391, %v394
        %v398 = vmul.f32 %v392, %v394
        %vm399 = vcmask 195584
        %v400 = vsel %vm399, %v395, 0.0
        %v401 = vsel %vm399, %v396, 0.0
        %v402 = vsel %vm399, %v397, 0.0
        %v403 = vsel %vm399, %v398, 0.0
        %v404 = vsel %vm379, %v400, 0.0
        %v405 = vsel %vm380, %v401, 0.0
        %v406 = vsel %vm381, %v402, 0.0
        %v407 = vsel %vm382, %v403, 0.0
        %v408 = vpack.c.bf16 %v404, %v404
        %v409 = vpack.c.bf16 %v405, %v405
        %v410 = vpack.c.bf16 %v406, %v406
        %v411 = vpack.c.bf16 %v407, %v407
        %vm412 = vcmask 257024
        %413 = vst.msk [vmem:[%s356] sm:$0xf] %vm412, %v408
        %414 = vst.msk [vmem:[%s356 + $0x4] sm:$0xf] %vm412, %v409
        %415 = vst.msk [vmem:[%s356 + $0x8] sm:$0xf] %vm412, %v410
        %416 = vst.msk [vmem:[%s356 + $0xc] sm:$0xf] %vm412, %v411
        %s417 = scalar_lea.vmem %s305, 32 [#allocation2]
        %v418 = vld [vmem:[%s417] sm:$0xff]
        %v419 = vld [vmem:[%s417 + $0x8] sm:$0xff]
        %v420 = vld [vmem:[%s417 + $0x10] sm:$0xff]
        %v421 = vld [vmem:[%s417 + $0x18] sm:$0xff]
        %s422 = sld [smem:[#allocation8 + $0x1]]
        %v423 = vstv %s422
        %v424 = vsub.f32 %v418, %v423
        %v425 = vsub.f32 %v419, %v423
        %v426 = vsub.f32 %v420, %v423
        %v427 = vsub.f32 %v421, %v423
        %s428 = sld [smem:[#allocation9 + $0x1]]
        %v429 = vstv %s428
        %v430 = vmul.f32 %v424, %v429
        %v431 = vmul.f32 %v425, %v429
        %v432 = vmul.f32 %v426, %v429
        %v433 = vmul.f32 %v427, %v429
        %v434 = vsel %vm399, %v430, 0.0
        %v435 = vsel %vm399, %v431, 0.0
        %v436 = vsel %vm399, %v432, 0.0
        %v437 = vsel %vm399, %v433, 0.0
        %v438 = vsel %vm379, %v434, 0.0
        %v439 = vsel %vm380, %v435, 0.0
        %v440 = vsel %vm381, %v436, 0.0
        %v441 = vsel %vm382, %v437, 0.0
        %v442 = vpack.c.bf16 %v438, %v438
        %v443 = vpack.c.bf16 %v439, %v439
        %v444 = vpack.c.bf16 %v440, %v440
        %v445 = vpack.c.bf16 %v441, %v441
        %s446 = scalar_lea.vmem %s356, 16 [#allocation11]
        %447 = vst.msk [vmem:[%s446] sm:$0xf] %vm412, %v442
        %448 = vst.msk [vmem:[%s446 + $0x4] sm:$0xf] %vm412, %v443
        %449 = vst.msk [vmem:[%s446 + $0x8] sm:$0xf] %vm412, %v444
        %450 = vst.msk [vmem:[%s446 + $0xc] sm:$0xf] %vm412, %v445
        %s451 = scalar_lea.vmem %s305, 64 [#allocation2]
        %v452 = vld [vmem:[%s451] sm:$0xff]
        %v453 = vld [vmem:[%s451 + $0x8] sm:$0xff]
        %v454 = vld [vmem:[%s451 + $0x10] sm:$0xff]
        %v455 = vld [vmem:[%s451 + $0x18] sm:$0xff]
        %s456 = sld [smem:[#allocation8 + $0x2]]
        %v457 = vstv %s456
        %v458 = vsub.f32 %v452, %v457
        %v459 = vsub.f32 %v453, %v457
        %v460 = vsub.f32 %v454, %v457
        %v461 = vsub.f32 %v455, %v457
        %s462 = sld [smem:[#allocation9 + $0x2]]
        %v463 = vstv %s462
        %v464 = vmul.f32 %v458, %v463
        %v465 = vmul.f32 %v459, %v463
        %v466 = vmul.f32 %v460, %v463
        %v467 = vmul.f32 %v461, %v463
        %v468 = vsel %vm399, %v464, 0.0
        %v469 = vsel %vm399, %v465, 0.0
        %v470 = vsel %vm399, %v466, 0.0
        %v471 = vsel %vm399, %v467, 0.0
        %v472 = vsel %vm379, %v468, 0.0
        %v473 = vsel %vm380, %v469, 0.0
        %v474 = vsel %vm381, %v470, 0.0
        %v475 = vsel %vm382, %v471, 0.0
        %v476 = vpack.c.bf16 %v472, %v472
        %v477 = vpack.c.bf16 %v473, %v473
        %v478 = vpack.c.bf16 %v474, %v474
        %v479 = vpack.c.bf16 %v475, %v475
        %s480 = scalar_lea.vmem %s356, 32 [#allocation11]
        %481 = vst.msk [vmem:[%s480] sm:$0xf] %vm412, %v476
        %482 = vst.msk [vmem:[%s480 + $0x4] sm:$0xf] %vm412, %v477
        %483 = vst.msk [vmem:[%s480 + $0x8] sm:$0xf] %vm412, %v478
        %484 = vst.msk [vmem:[%s480 + $0xc] sm:$0xf] %vm412, %v479
        %v485 = vld [vmem:[%s315] sm:$0xff]
        %v486 = vld [vmem:[%s315 + $0x8] sm:$0xff]
        %v487 = vld [vmem:[%s315 + $0x10] sm:$0xff]
        %v488 = vld [vmem:[%s315 + $0x18] sm:$0xff]
        %v489 = vsel %vm399, %v485, 0.0
        %v490 = vsel %vm399, %v486, 0.0
        %v491 = vsel %vm399, %v487, 0.0
        %v492 = vsel %vm399, %v488, 0.0
        %v493 = vsel %vm379, %v489, 0.0
        %v494 = vsel %vm380, %v490, 0.0
        %v495 = vsel %vm381, %v491, 0.0
        %v496 = vsel %vm382, %v492, 0.0
        %v497 = vpack.c.bf16 %v493, %v493
        %v498 = vpack.c.bf16 %v494, %v494
        %v499 = vpack.c.bf16 %v495, %v495
        %v500 = vpack.c.bf16 %v496, %v496
        %s501 = scalar_lea.vmem %s356, 48 [#allocation11]
        %502 = vst.msk [vmem:[%s501] sm:$0xf] %vm412, %v497
        %503 = vst.msk [vmem:[%s501 + $0x4] sm:$0xf] %vm412, %v498
        %504 = vst.msk [vmem:[%s501 + $0x8] sm:$0xf] %vm412, %v499
        %505 = vst.msk [vmem:[%s501 + $0xc] sm:$0xf] %vm412, %v500
        %s506 = sand.u32 %s154, 1
        %s507 = scalar_lea.sflag [#allocation4], %s506
        %s508 = sand.u32 %s154, 1
        %s509 = smul.addr %s508, 64
        %s510 = scalar_lea.vmem [#allocation11], %s509
        // Predicated region
        $region53: #{tpu_custom_call.1} parent=35 // pred_check
          %p511 = pneg %p164
        $region54: #{tpu_custom_call.1} parent=35 // pred_check_branch
          %513 = sbr.rel (%p511) target = $region56
        $region55: #{tpu_custom_call.1} parent=35 // pred_region
          %s514 = smul.u32 4, %s31
          %516 = vsyncadd %s507, 0
          %s517 = smul.addr %s30, 16
          %s518 = sadd.s32 %s514, %s517
          %s519 = smul.addr %s518, 4
          %s520 = scalar_lea.hbm %s4, %s519
          %s521 = sshll.u32 %s510, 4
          %s522 = int_to_ptr.vmem [resolvable:$true] %s521
          %s523 = sshll.u32 %s520, 4
          %s524 = int_to_ptr.hbm [resolvable:$true] %s523
          %529 = dma.vmem_to_hbm [thread:$0]  %s522, 1024, %s524, %s507, 64, 64, 4
        $region56: #{tpu_custom_call.1} parent=35 // pred_fallthru
          _
      $region36: #{tpu_custom_call.1} parent=5 // pred_fallthru
        _
      %p530 = scmp.le.s32.totalorder 2, %s21
      // Predicated region
      $region57: #{tpu_custom_call.1} parent=5 // pred_check
        %p531 = pneg %p530
      $region58: #{tpu_custom_call.1} parent=5 // pred_check_branch
        %533 = sbr.rel (%p531) target = $region60
      $region59: #{tpu_custom_call.1} parent=5 // pred_region
        %s534 = ssub.s32 %s21, 2
        // Predicated region
        $region61: #{tpu_custom_call.1} parent=59 // pred_check
          %p535 = pneg %p170
        $region62: #{tpu_custom_call.1} parent=59 // pred_check_branch
          %537 = sbr.rel (%p535) target = $region64
        $region63: #{tpu_custom_call.1} parent=59 // pred_region
          %s538 = sand.u32 %s155, 1
          %s539 = scalar_lea.sflag [#allocation4], %s538
          %s540 = sand.u32 %s155, 1
          %s541 = smul.addr %s540, 64
          %s542 = scalar_lea.vmem [#allocation11], %s541
          %544 = dma.done %s539, 1024
        $region64: #{tpu_custom_call.1} parent=59 // pred_fallthru
          _
      $region60: #{tpu_custom_call.1} parent=5 // pred_fallthru
        _
    $region6: #{tpu_custom_call.1} parent=1 // loop_footer
      %s25 = sadd.s32 1, %s21
    $region7: #{tpu_custom_call.1} parent=1 // loop_footer_branch
      %20 = sbr.rel target = $region3
    $region8: #{tpu_custom_call.1} parent=1 // loop_exit
      _
    %545 = vsyncpa [#allocation3], 1
    %s546 = scalar_lea.sflag [#allocation3], 1
    %547 = vsyncpa %s546, 1
    %548 = vsyncpa [#allocation7], 1
    %s549 = scalar_lea.sflag [#allocation7], 1
    %550 = vsyncpa %s549, 1
    %551 = vsyncpa [#allocation4], 1
    %s552 = scalar_lea.sflag [#allocation4], 1
    %553 = vsyncpa %s552, 1
    %554 = vsyncpa [#allocation5], 1
    %s555 = scalar_lea.sflag [#allocation5], 1
    %556 = vsyncpa %s555, 1
    %557 = vsyncpa [#allocation10], 1

</llo_original>
